<compile_context>
chip_gen: v7x
topology: tpu7x:2x2x1
jax: 0.10.0
libtpu: 0.0.40
codegen_flags: <defaults>
</compile_context>

<pallas_src>
import jax
import jax.numpy as jnp
from jax import lax
from jax.experimental import pallas as pl
from jax.experimental.pallas import tpu as pltpu

EPS = 1e-12
POWER_ITERATIONS = 1
_VMEM_BUDGET = 20 * 2**20     # shrink tiles above this rough per-step footprint


# ---------------------------------------------------------------------------
# small helpers
# ---------------------------------------------------------------------------
def _round_up(x, m):
    return (x + m - 1) // m * m


def _cdiv(a, b):
    return -(-a // b)


def _pick_cout_tile(cout):
    """Single co-tile covering the (16-aligned) padded Cout up to 256."""
    cout_p = _round_up(cout, 16)            # bf16 sublane packing
    if cout_p <= 256:
        return cout_p, cout_p               # (tco, Cout_p): patches/x read once
    tco = 256                               # MXU-height tile for big layers
    return tco, _round_up(cout_p, tco)


def _pick_m_tile(m_raw, other_parallel_units):
    """m tile: multiple of 128, capped at 2048, tight padding; force >=2 tiles
    when nothing else feeds v7x's second TensorCore."""
    n_tiles = _cdiv(m_raw, 2048)
    if other_parallel_units < 2 and n_tiles < 2 and m_raw > 128:
        n_tiles = 2
    tm = _round_up(_cdiv(m_raw, n_tiles), 128)
    return tm, _round_up(m_raw, tm)


def _vmem_estimate(cin, l_pad, kk, tco, tm):
    """Rough per-step VMEM footprint (double-buffered operands + temporaries)."""
    lane = lambda n: _round_up(max(n, 1), 128)
    x_b = 2 * cin * lane(l_pad) * 2                      # bf16 x slab (x2 buffers)
    w_b = 2 * kk * _round_up(tco, 16) * lane(cin) * 2    # bf16 weights
    o_b = 2 * _round_up(tco, 16) * lane(tm) * 2          # bf16 output tile
    acc = _round_up(tco, 8) * lane(tm) * 4               # f32 accumulator
    win = 2 * cin * lane(tm + 256) * 2                   # halo window + slice temps
    return x_b + w_b + o_b + acc + win + (1 << 20)


# ---------------------------------------------------------------------------
# Kernel 1: spectral-norm power iteration -> 1/sigma, u, v (all tiny, f32)
#   w_ref : [H, Wd]   (= w_bar.view(height, -1))
#   u_ref : [1, H]
# outputs: inv_sigma [1,1], updated u [1,H], updated v [1,Wd]
# (the initial v buffer is never read by the PyTorch forward, so not an input)
# ---------------------------------------------------------------------------
def _power_iter_kernel(w_ref, u_ref, inv_sigma_ref, uout_ref, vout_ref):
    w = w_ref[...]                      # [H, Wd]  f32
    u = u_ref[...]                      # [1, H]   f32
    v = None
    wv = None
    for _ in range(POWER_ITERATIONS):
        # v = l2normalize(W^T u)   (row-vector form: u @ W)
        v = jnp.dot(u, w, preferred_element_type=jnp.float32)             # [1, Wd]
        v = v * (1.0 / (jnp.sqrt(jnp.sum(v * v)) + EPS))
        # u = l2normalize(W v)     (contract over Wd without materializing W^T)
        wv = lax.dot_general(v, w, (((1,), (1,)), ((), ())),
                             preferred_element_type=jnp.float32)           # [1, H]
        u = wv * (1.0 / (jnp.sqrt(jnp.sum(wv * wv)) + EPS))
    sigma = jnp.sum(u * wv, axis=1, keepdims=True)                         # [1, 1]
    inv_sigma_ref[...] = 1.0 / sigma
    uout_ref[...] = u
    vout_ref[...] = v


def spectral_norm_power_iter(w_mat, u_row):
    # TODO(synk): for very large conv layers (Cout*K*4B near the scoped VMEM
    # default) tile the power iteration over K with an accumulating grid or raise
    # vmem_limit_bytes; here the whole f32 weight is assumed to fit VMEM untiled.
    H, Wd = w_mat.shape
    vmem = pl.BlockSpec(memory_space=pltpu.MemorySpace.VMEM)
    return pl.pallas_call(
        _power_iter_kernel,
        out_shape=(jax.ShapeDtypeStruct((1, 1), jnp.float32),
                   jax.ShapeDtypeStruct((1, H), jnp.float32),
                   jax.ShapeDtypeStruct((1, Wd), jnp.float32)),
        in_specs=[vmem, vmem],
        out_specs=(vmem, vmem, vmem),
    )(w_mat, u_row)


# ---------------------------------------------------------------------------
# Kernel 2: fused im2col-free conv-as-matmul with scale + bias epilogue.
#   grid = (N, Cout_p//tco, M_p//tm)   -- no reduction axis: the contraction over
#   (Cin, kh*kw) happens entirely in-kernel against the VMEM-resident x slab.
#
#   inv_sigma : [1, 1]            f32   (SMEM scalar)
#   w_k       : [kh*kw, Cout_p, Cin]  bf16  (unscaled w_bar, per-offset slabs)
#   b_col     : [Cout_p, 1]       f32
#   x_flat    : [N, Cin, L_pad]   bf16  (padded image flattened over (Hp', Wp))
#   out       : [N, Cout_p, M_p]  bf16  (padded-width grid: M = Ho*Wp positions)
#
# For output flat index m = y*Wp + x, kernel offset (ki,kj) needs
# x_flat[c, m + ki*Wp + kj]  -- a constant lane shift, so every shifted view is a
# contiguous slice of one halo'd window.  Columns x in [Wo, Wp) are garbage and
# are sliced away afterwards (Wp/Wo ~= 12% extra flops, vs. 9x HBM for im2col).
# ---------------------------------------------------------------------------
def fused_conv2d(inv_sigma, w_k, b_col, x_flat, *, Wp, kh, kw, tco, tm, M_p,
                 vmem_limit=None, out_dtype=jnp.bfloat16):
    N, Cin, L_pad = x_flat.shape
    KK, Cout_p, _ = w_k.shape
    n_co = Cout_p // tco
    n_m = M_p // tm
    offsets = [ki * Wp + kj for ki in range(kh) for kj in range(kw)]
    halo_p = _round_up(offsets[-1], 128)
    win = tm + halo_p                       # static, 128-aligned window size
    assert L_pad >= (M_p - tm) + win, "x slab too short for the halo window"

    def kernel(inv_s_ref, w_ref, b_ref, x_ref, o_ref):
        if n_m > 1:
            m0 = pl.multiple_of(pl.program_id(2) * tm, 128)
        else:
            m0 = 0                                              # fully static path
        x_all = x_ref[0, :, pl.ds(m0, win)]                     # (Cin, win)  bf16
        acc = jnp.zeros((tco, tm), jnp.float32)
        for idx, off in enumerate(offsets):                     # kh*kw static steps
            xs = x_all[:, off:off + tm]                         # (Cin, tm)   bf16
            acc = acc + jnp.dot(w_ref[idx], xs,
                                preferred_element_type=jnp.float32)
        inv_s = inv_s_ref[0, 0]
        o_ref[0] = (acc * inv_s + b_ref[...]).astype(o_ref.dtype)

    return pl.pallas_call(
        kernel,
        out_shape=jax.ShapeDtypeStruct((N, Cout_p, M_p), out_dtype),
        grid_spec=pltpu.PrefetchScalarGridSpec(
            num_scalar_prefetch=0,
            grid=(N, n_co, n_m),
            in_specs=[
                pl.BlockSpec(memory_space=pltpu.MemorySpace.SMEM),          # 1/sigma
                pl.BlockSpec((KK, tco, Cin), lambda n, co, m: (0, co, 0)),  # weights
                pl.BlockSpec((tco, 1), lambda n, co, m: (co, 0)),           # bias
                pl.BlockSpec((1, Cin, L_pad), lambda n, co, m: (n, 0, 0)),  # x slab
            ],
            out_specs=pl.BlockSpec((1, tco, tm), lambda n, co, m: (n, co, m)),
        ),
        compiler_params=pltpu.CompilerParams(
            # No cross-step accumulation -> every axis is independent.
            dimension_semantics=("parallel", "parallel", "parallel"),
            vmem_limit_bytes=vmem_limit),
    )(inv_sigma, w_k, b_col, x_flat)


# ---------------------------------------------------------------------------
# Full SpectralNorm(Conv2d).forward
# ---------------------------------------------------------------------------
def spectral_norm_conv2d_forward(x, w_bar, bias, u, *, padding=1):
    N, Cin, H, W = x.shape
    Cout, _, kh, kw = w_bar.shape
    Hp, Wp = H + 2 * padding, W + 2 * padding
    Ho, Wo = Hp - kh + 1, Wp - kw + 1
    K = Cin * kh * kw

    # ---- Pallas kernel 1: power iteration -> 1/sigma, u, v (f32, tiny) ----
    w_mat = w_bar.reshape(Cout, K).astype(jnp.float32)
    inv_sigma, u_new, v_new = spectral_norm_power_iter(
        w_mat, u.reshape(1, Cout).astype(jnp.float32))

    # ---- tile planning (lane-aligned, single co-tile when possible) ----
    tco, Cout_p = _pick_cout_tile(Cout)
    n_co = Cout_p // tco
    m_raw = Ho * Wp                          # conv on the padded-width grid
    tm, M_p = _pick_m_tile(m_raw, N * n_co)

    halo = (kh - 1) * Wp + (kw - 1)
    halo_p = _round_up(halo, 128)

    def _plan(tm_):
        M_p_ = _round_up(m_raw, tm_)
        need_L = M_p_ + halo_p
        extra_rows_ = max(0, _cdiv(need_L - Hp * Wp, Wp))
        L_pad_ = (Hp + extra_rows_) * Wp
        return M_p_, extra_rows_, L_pad_, _vmem_estimate(Cin, L_pad_, kh * kw, tco, tm_)

    M_p, extra_rows, L_pad, est = _plan(tm)
    while est > _VMEM_BUDGET and tm > 128:   # keep v7x's 64 MiB / scoped limits safe
        tm = max(128, _round_up(tm // 2, 128))
        M_p, extra_rows, L_pad, est = _plan(tm)
    vmem_limit = int(min(56 * 2**20, 2 * est)) if est > 12 * 2**20 else None

    # ---- input prep: ONE pad of x, flattened (no 9x im2col, no second pad) ----
    # TODO(synk): for images whose per-batch padded slab exceeds VMEM, switch to a
    # manual row-band DMA (memory_space=pl.ANY + make_async_copy) instead of a
    # fully-resident per-batch block.
    x_flat = jnp.pad(
        x.astype(jnp.bfloat16),
        ((0, 0), (0, 0), (padding, padding + extra_rows), (padding, padding)),
    ).reshape(N, Cin, L_pad)

    # ---- weight / bias prep (weight-sized XLA ops only; weight stays unscaled,
    #      1/sigma is applied in the kernel epilogue) ----
    w_k = jnp.transpose(w_bar, (2, 3, 0, 1)).reshape(kh * kw, Cout, Cin)
    w_k = jnp.pad(w_k, ((0, 0), (0, Cout_p - Cout), (0, 0))).astype(jnp.bfloat16)
    b_col = jnp.pad(bias.astype(jnp.float32), (0, Cout_p - Cout)).reshape(Cout_p, 1)

    # ---- Pallas kernel 2: fused conv (MXU matmuls + scale/bias epilogue) ----
    out_flat = fused_conv2d(inv_sigma, w_k, b_col, x_flat,
                            Wp=Wp, kh=kh, kw=kw, tco=tco, tm=tm, M_p=M_p,
                            vmem_limit=vmem_limit)

    # Drop padded Cout rows and the padded-width garbage columns (output-sized op).
    out = out_flat[:, :Cout, :Ho * Wp].reshape(N, Cout, Ho, Wp)[:, :, :, :Wo]
    return out, u_new.reshape(-1), v_new.reshape(-1)


# ---------------------------------------------------------------------------
# Reference (plain JAX, f32) for verification
# ---------------------------------------------------------------------------
def reference_forward(x, w_bar, bias, u, *, padding=1):
    Cout = w_bar.shape[0]
    w_mat = w_bar.reshape(Cout, -1).astype(jnp.float32)
    uu = u
    v = None
    wv = None
    for _ in range(POWER_ITERATIONS):
        v = (w_mat * uu[:, None]).sum(axis=0)            # W^T u
        v = v / (jnp.linalg.norm(v) + EPS)
        wv = (w_mat * v[None, :]).sum(axis=1)            # W v
        uu = wv / (jnp.linalg.norm(wv) + EPS)
    sigma = jnp.sum(uu * wv)
    w = w_bar / sigma
    out = lax.conv_general_dilated(
        x, w, window_strides=(1, 1),
        padding=((padding, padding), (padding, padding)),
        dimension_numbers=('NCHW', 'OIHW', 'NCHW'),
        precision=lax.Precision.HIGHEST)
    return out + bias.reshape(1, Cout, 1, 1), uu, v


if __name__ == "__main__":
    key = jax.random.PRNGKey(0)
    k_x, k_w, k_b, k_u, k_v = jax.random.split(key, 5)

    # SpectralNorm(nn.Conv2d(4, 8, kernel_size=3, padding=1)) on a 2x4x16x16 input
    N, Cin, H, W = 2, 4, 16, 16
    Cout, kh, kw = 8, 3, 3

    x = jax.random.normal(k_x, (N, Cin, H, W), dtype=jnp.float32)
    w_bar = jax.random.normal(k_w, (Cout, Cin, kh, kw), dtype=jnp.float32) * 0.1
    bias = jax.random.normal(k_b, (Cout,), dtype=jnp.float32) * 0.05

    # u, v ~ N(0,1), then l2-normalized (as in SpectralNorm._make_params)
    u0 = jax.random.normal(k_u, (Cout,), dtype=jnp.float32)
    u0 = u0 / (jnp.linalg.norm(u0) + EPS)
    v0 = jax.random.normal(k_v, (Cin * kh * kw,), dtype=jnp.float32)
    v0 = v0 / (jnp.linalg.norm(v0) + EPS)   # unused by forward (power_iterations=1)

    out, u_new, v_new = spectral_norm_conv2d_forward(x, w_bar, bias, u0)
    out = jax.block_until_ready(out)

    ref_out, ref_u, ref_v = reference_forward(x, w_bar, bias, u0)

    assert out.shape == (N, Cout, H, W)
    # Power iteration runs entirely in f32 -> tight tolerance.
    assert jnp.allclose(u_new, ref_u, atol=1e-3, rtol=1e-3), "u mismatch vs reference"
    assert jnp.allclose(v_new, ref_v, atol=1e-3, rtol=1e-3), "v mismatch vs reference"
    # Conv path is bf16-in / bf16-out with f32 MXU accumulation -> bf16 tolerance.
    assert jnp.allclose(out.astype(jnp.float32), ref_out, atol=3e-2, rtol=3e-2), \
        "output mismatch vs reference"

    print("KERNEL_OK")
</pallas_src>

<mosaic_0001>
module attributes {stable_mosaic.version = 11 : i64} {
  func.func @_power_iter_kernel(%arg0: memref<8x36xf32, #tpu.memory_space<vmem>>, %arg1: memref<1x8xf32, #tpu.memory_space<vmem>>, %arg2: memref<1x1xf32, #tpu.memory_space<vmem>>, %arg3: memref<1x8xf32, #tpu.memory_space<vmem>>, %arg4: memref<1x36xf32, #tpu.memory_space<vmem>>) attributes {dimension_semantics = [], scalar_prefetch = 0 : i64, scratch_operands = 0 : i64, tpu.core_type = #tpu.core_type<tc>} {
    %c0 = arith.constant 0 : index
    %c0_0 = arith.constant 0 : index
    %0 = vector.load %arg0[%c0, %c0_0] : memref<8x36xf32, #tpu.memory_space<vmem>>, vector<8x36xf32>
    %c0_1 = arith.constant 0 : index
    %c0_2 = arith.constant 0 : index
    %1 = vector.load %arg1[%c0_1, %c0_2] : memref<1x8xf32, #tpu.memory_space<vmem>>, vector<1x8xf32>
    %cst = arith.constant dense<0.000000e+00> : vector<1x36xf32>
    %2 = tpu.matmul %1, %0, %cst {dimension_numbers = #tpu.dot_dimension_numbers<[1], [0], [0], [1], [0, 0, 1, 1], [], []>} : vector<1x8xf32>, vector<8x36xf32>, vector<1x36xf32> -> vector<1x36xf32>
    %3 = arith.mulf %2, %2 : vector<1x36xf32>
    %4 = vector.shape_cast %3 : vector<1x36xf32> to vector<1x1x36xf32>
    %cst_3 = arith.constant dense<0.000000e+00> : vector<1xf32>
    %5 = vector.multi_reduction <add>, %4, %cst_3 [1, 2] : vector<1x1x36xf32> to vector<1xf32>
    %6 = vector.shape_cast %5 : vector<1xf32> to vector<1x1x1xf32>
    %7 = vector.extract %6[0, 0, 0] : f32 from vector<1x1x1xf32>
    %8 = math.sqrt %7 : f32
    %cst_4 = arith.constant 9.99999996E-13 : f32
    %9 = arith.addf %8, %cst_4 : f32
    %cst_5 = arith.constant 1.000000e+00 : f32
    %10 = arith.divf %cst_5, %9 : f32
    %11 = vector.broadcast %10 : f32 to vector<1x36xf32>
    %12 = arith.mulf %2, %11 : vector<1x36xf32>
    %cst_6 = arith.constant dense<0.000000e+00> : vector<1x8xf32>
    %13 = tpu.matmul %12, %0, %cst_6 {dimension_numbers = #tpu.dot_dimension_numbers<[1], [1], [0], [0], [0, 0, 1, 0], [], []>} : vector<1x36xf32>, vector<8x36xf32>, vector<1x8xf32> -> vector<1x8xf32>
    %14 = arith.mulf %13, %13 : vector<1x8xf32>
    %15 = vector.shape_cast %14 : vector<1x8xf32> to vector<1x1x8xf32>
    %cst_7 = arith.constant dense<0.000000e+00> : vector<1xf32>
    %16 = vector.multi_reduction <add>, %15, %cst_7 [1, 2] : vector<1x1x8xf32> to vector<1xf32>
    %17 = vector.shape_cast %16 : vector<1xf32> to vector<1x1x1xf32>
    %18 = vector.extract %17[0, 0, 0] : f32 from vector<1x1x1xf32>
    %19 = math.sqrt %18 : f32
    %cst_8 = arith.constant 9.99999996E-13 : f32
    %20 = arith.addf %19, %cst_8 : f32
    %cst_9 = arith.constant 1.000000e+00 : f32
    %21 = arith.divf %cst_9, %20 : f32
    %22 = vector.broadcast %21 : f32 to vector<1x8xf32>
    %23 = arith.mulf %13, %22 : vector<1x8xf32>
    %24 = arith.mulf %23, %13 : vector<1x8xf32>
    %cst_10 = arith.constant dense<0.000000e+00> : vector<1xf32>
    %25 = vector.multi_reduction <add>, %24, %cst_10 [1] : vector<1x8xf32> to vector<1xf32>
    %26 = vector.shape_cast %25 : vector<1xf32> to vector<1x1xf32>
    %cst_11 = arith.constant 1.000000e+00 : f32
    %27 = vector.broadcast %cst_11 : f32 to vector<1x1xf32>
    %28 = arith.divf %27, %26 : vector<1x1xf32>
    %c0_12 = arith.constant 0 : index
    %c0_13 = arith.constant 0 : index
    %29 = vector.load %arg2[%c0_12, %c0_13] : memref<1x1xf32, #tpu.memory_space<vmem>>, vector<1x1xf32>
    tpu.vector_store %arg2[%c0_12, %c0_13], %28 {strides = array<i32>} : memref<1x1xf32, #tpu.memory_space<vmem>>, vector<1x1xf32>,
    %c0_14 = arith.constant 0 : index
    %c0_15 = arith.constant 0 : index
    %30 = vector.load %arg3[%c0_14, %c0_15] : memref<1x8xf32, #tpu.memory_space<vmem>>, vector<1x8xf32>
    tpu.vector_store %arg3[%c0_14, %c0_15], %23 {strides = array<i32>} : memref<1x8xf32, #tpu.memory_space<vmem>>, vector<1x8xf32>,
    %c0_16 = arith.constant 0 : index
    %c0_17 = arith.constant 0 : index
    %31 = vector.load %arg4[%c0_16, %c0_17] : memref<1x36xf32, #tpu.memory_space<vmem>>, vector<1x36xf32>
    tpu.vector_store %arg4[%c0_16, %c0_17], %12 {strides = array<i32>} : memref<1x36xf32, #tpu.memory_space<vmem>>, vector<1x36xf32>,
    return
  }
}

</mosaic_0001>

<llo_original>
// kernel: tpu_custom_call.1
$region0: #{tpu_custom_call.1}
  #allocation0 [shape = 'u32[]', space=smem, size = 0x4, offset = 0x4, fixed_abs, tag = 'smem constant byte address 0x4 - core index']
  #allocation1 [shape = 'u32[144,128]{1,0:T(1,128)}', space=vmem, size = 0x12000, scoped, tag = 'internal scratch']
  %s0 = inlined_call_operand.hbm [shape: f32[8,36], index: 0, kind: input, shape index: {}]
  %s1 = inlined_call_operand.vmem [shape: f32[1,8], index: 1, kind: input, shape index: {}]
  %s2 = inlined_call_operand.hbm [shape: f32[1,1], index: 2, kind: output, shape index: {0}]
  %s3 = inlined_call_operand.hbm [shape: f32[1,8], index: 3, kind: output, shape index: {1}]
  %s4 = inlined_call_operand.hbm [shape: f32[1,36], index: 4, kind: output, shape index: {2}]
  %5 = xla_tuple %s2, %s3, %s4
  %s6 = sld [smem:[#allocation0]]
  $region38: #{tpu_custom_call.1} parent=0
    _
  %s8 = ssub.s32 1, %s6
  %s9 = scalar_select 0, %s8, %s6
  $region1: #{tpu_custom_call.1} parent=0
    #allocation2 [shape = 'u8[4096]{0}', space=vmem, size = 0x1000, scoped, tag = 'input window, operand 0, single buffered']
    #allocation3 [shape = 's32[1]{0}', space=sflag, size = 0x4, scoped, tag = 'scoped memory for tpu_custom_call.1']
    #allocation4 [shape = 's32[1]{0}', space=sflag, size = 0x4, scoped, tag = 'scoped memory for tpu_custom_call.1']
    #allocation5 [shape = 'u8[512]{0}', space=vmem, size = 0x400, scoped, tag = 'output window, operand 0, single buffered']
    #allocation6 [shape = 'u8[512]{0}', space=vmem, size = 0x400, scoped, tag = 'output window, operand 1, single buffered']
    #allocation7 [shape = 's32[1]{0}', space=sflag, size = 0x4, scoped, tag = 'scoped memory for tpu_custom_call.1']
    #allocation8 [shape = 'u8[512]{0}', space=vmem, size = 0x400, scoped, tag = 'output window, operand 2, single buffered']
    %10 = vsyncpa [#allocation3], 0
    %11 = vsyncpa [#allocation4], 0
    %12 = vsyncpa [#allocation7], 0
    // Predicated region
    $region2: #{tpu_custom_call.1} parent=1 // pred_check
      _
    $region3: #{tpu_custom_call.1} parent=1 // pred_check_branch
      %14 = sbr.rel (0) target = $region5
    $region4: #{tpu_custom_call.1} parent=1 // pred_region
      %s16 = ssub.s32 128, 128
      %17 = vsyncadd [#allocation3], %s16
      %s19 = sshll.u32 [#allocation2], 4
      %s20 = int_to_ptr.vmem [resolvable:$true] %s19
      %22 = dma.hbm_to_vmem [thread:$0]  %s0, 128, %s20, [#allocation3]
    $region5: #{tpu_custom_call.1} parent=1 // pred_fallthru
      _
    // Predicated region
    $region6: #{tpu_custom_call.1} parent=1 // pred_check
      _
    $region7: #{tpu_custom_call.1} parent=1 // pred_check_branch
      %24 = sbr.rel (0) target = $region9
    $region8: #{tpu_custom_call.1} parent=1 // pred_region
      _
    $region9: #{tpu_custom_call.1} parent=1 // pred_fallthru
      _
    // Predicated region
    $region10: #{tpu_custom_call.1} parent=1 // pred_check
      _
    $region11: #{tpu_custom_call.1} parent=1 // pred_check_branch
      %26 = sbr.rel (0) target = $region13
    $region12: #{tpu_custom_call.1} parent=1 // pred_region
      %27 = dma.done [#allocation3], 128
    $region13: #{tpu_custom_call.1} parent=1 // pred_fallthru
      _
    %v28 = vld [vmem:[#allocation2] sm:$0xff]
    %v29 = vld [vmem:[%s1] sm:$0x1]
    %vm30 = vcmask 64512
    %v32 = vsel %vm30, %v29, 0
    %34 = vmatprep.subr.mxu0 0.0
    %35 = vmatpush1.msra.mxu0 %v28
    %36 = vmatprep.subr.mxu0 0.0
    %37 = vmatpush1.msra.mxu0 0.0
    %38 = vmatprep.subr.mxu0 0.0
    %39 = vmatpush1.msra.mxu0 0.0
    %40 = vmatprep.subr.mxu0 0.0
    %41 = vmatpush1.msra.mxu0 0.0
    %42 = vmatprep.subr.mxu0 0.0
    %43 = vmatpush1.msra.mxu0 0.0
    %44 = vmatprep.subr.mxu0 0.0
    %45 = vmatpush1.msra.mxu0 0.0
    %46 = vmatprep.subr.mxu0 0.0
    %47 = vmatpush1.msra.mxu0 0.0
    %48 = vmatprep.subr.mxu0 0.0
    %49 = vmatpush1.msra.mxu0 0.0
    %50 = vmatprep.subr.mxu0 0.0
    %51 = vmatpush1.msra.mxu0 0.0
    %52 = vmatprep.subr.mxu0 0.0
    %53 = vmatpush1.msra.mxu0 0.0
    %54 = vmatprep.subr.mxu0 0.0
    %55 = vmatpush1.msra.mxu0 0.0
    %56 = vmatprep.subr.mxu0 0.0
    %57 = vmatpush1.msra.mxu0 0.0
    %58 = vmatprep.subr.mxu0 0.0
    %59 = vmatpush1.msra.mxu0 0.0
    %60 = vmatprep.subr.mxu0 0.0
    %61 = vmatpush1.msra.mxu0 0.0
    %62 = vmatprep.subr.mxu0 0.0
    %63 = vmatpush1.msra.mxu0 0.0
    %64 = vmatprep.subr.mxu0 0.0
    %65 = vmatpush1.msra.mxu0 0.0
    %66 = vmatprep.subr.mxu0 0.0
    %67 = vmatpush1.msra.mxu0 0.0
    %68 = vmatprep.subr.mxu0 0.0
    %69 = vmatpush1.msra.mxu0 0.0
    %70 = vmatprep.subr.mxu0 0.0
    %71 = vmatpush1.msra.mxu0 0.0
    %72 = vmatprep.subr.mxu0 0.0
    %73 = vmatpush1.msra.mxu0 0.0
    %74 = vmatprep.subr.mxu0 0.0
    %75 = vmatpush1.msra.mxu0 0.0
    %76 = vmatprep.subr.mxu0 0.0
    %77 = vmatpush1.msra.mxu0 0.0
    %78 = vmatprep.subr.mxu0 0.0
    %79 = vmatpush1.msra.mxu0 0.0
    %80 = vmatprep.subr.mxu0 0.0
    %81 = vmatpush1.msra.mxu0 0.0
    %82 = vmatprep.subr.mxu0 0.0
    %83 = vmatpush1.msra.mxu0 0.0
    %84 = vmatprep.subr.mxu0 0.0
    %85 = vmatpush1.msra.mxu0 0.0
    %86 = vmatprep.subr.mxu0 0.0
    %87 = vmatpush1.msra.mxu0 0.0
    %88 = vmatprep.subr.mxu0 0.0
    %89 = vmatpush1.msra.mxu0 0.0
    %90 = vmatprep.subr.mxu0 0.0
    %91 = vmatpush1.msra.mxu0 0.0
    %92 = vmatprep.subr.mxu0 0.0
    %93 = vmatpush1.msra.mxu0 0.0
    %94 = vmatprep.subr.mxu0 0.0
    %95 = vmatpush1.msra.mxu0 0.0
    %96 = vmatprep.subr.mxu0 0.0
    %97 = vmatpush1.msra.mxu0 0.0
    %98 = vmatprep.mubr.f32.mxu0 0.0
    %99 = vmatmul.mubr.f32.gmra.mrb[0].mxu0 %v32
    %v100 = vpop.f32.mrb[0].mxu0
    %v101 = vadd.f32 0.0, %v100
    %v102 = vpop.f32.mrb[0].mxu0
    %103 = vdwg.mxu0
    %v104 = vmul.f32 %v101, %v101
    %vm105 = vcmask 286720
    %v106 = vsel %vm105, %v104, 0.0
    %107 = vadd.xlane.f32.xlu0 %v106
    %v108 = vpop.xlane.xlu0 %107
    %v109 = vrot.slane %v108, 4
    %v110 = vadd.f32 %v108, %v109
    %v111 = vrot.slane %v110, 2
    %v112 = vadd.f32 %v110, %v111
    %v113 = vrot.slane %v112, 1
    %v114 = vadd.f32 %v112, %v113
    %s115 = vtos %v114
    %v116 = vstv %s115
    %v117 = vrsqrt.pop %v116
    %v118 = vmul.f32 %v116, %v117
    %vm119 = vcmp.eq.f32.partialorder %v116, inf
    %v120 = vsel %vm119, %v116, %v118
    %vm121 = vcmp.eq.f32.partialorder %v116, 0.0
    %v122 = vand.u32 %v116, 2147483648
    %v123 = vsel %vm121, %v122, %v120
    %s124 = vtos %v123
    %s125 = sadd.f32 %s124, 1e-12
    %v126 = vstv %s125
    %v127 = vrcp.pop %v126
    %s128 = vtos %v127
    %v129 = vstv %s128
    %v130 = vmul.f32 %v101, %v129
    %vm131 = vcmask 293888
    %v133 = vsel %vm131, %v130, 0
    %v136 = vsel %vm131, %v28, 0
    %138 = vmatprep.subr.mxu0 0.0
    %139 = vmatpush1.xpose.msra.mxu0 %v136
    %140 = vmatprep.subr.mxu0 0.0
    %141 = vmatpush1.xpose.msra.mxu0 0.0
    %142 = vmatprep.subr.mxu0 0.0
    %143 = vmatpush1.xpose.msra.mxu0 0.0
    %144 = vmatprep.subr.mxu0 0.0
    %145 = vmatpush1.xpose.msra.mxu0 0.0
    %146 = vmatprep.subr.mxu0 0.0
    %147 = vmatpush1.xpose.msra.mxu0 0.0
    %148 = vmatprep.subr.mxu0 0.0
    %149 = vmatpush1.xpose.msra.mxu0 0.0
    %150 = vmatprep.subr.mxu0 0.0
    %151 = vmatpush1.xpose.msra.mxu0 0.0
    %152 = vmatprep.subr.mxu0 0.0
    %153 = vmatpush1.xpose.msra.mxu0 0.0
    %154 = vmatprep.subr.mxu0 0.0
    %155 = vmatpush1.xpose.msra.mxu0 0.0
    %156 = vmatprep.subr.mxu0 0.0
    %157 = vmatpush1.xpose.msra.mxu0 0.0
    %158 = vmatprep.subr.mxu0 0.0
    %159 = vmatpush1.xpose.msra.mxu0 0.0
    %160 = vmatprep.subr.mxu0 0.0
    %161 = vmatpush1.xpose.msra.mxu0 0.0
    %162 = vmatprep.subr.mxu0 0.0
    %163 = vmatpush1.xpose.msra.mxu0 0.0
    %164 = vmatprep.subr.mxu0 0.0
    %165 = vmatpush1.xpose.msra.mxu0 0.0
    %166 = vmatprep.subr.mxu0 0.0
    %167 = vmatpush1.xpose.msra.mxu0 0.0
    %168 = vmatprep.subr.mxu0 0.0
    %169 = vmatpush1.xpose.msra.mxu0 0.0
    %170 = vmatprep.subr.mxu0 0.0
    %171 = vmatpush1.xpose.msra.mxu0 0.0
    %172 = vmatprep.subr.mxu0 0.0
    %173 = vmatpush1.xpose.msra.mxu0 0.0
    %174 = vmatprep.subr.mxu0 0.0
    %175 = vmatpush1.xpose.msra.mxu0 0.0
    %176 = vmatprep.subr.mxu0 0.0
    %177 = vmatpush1.xpose.msra.mxu0 0.0
    %178 = vmatprep.subr.mxu0 0.0
    %179 = vmatpush1.xpose.msra.mxu0 0.0
    %180 = vmatprep.subr.mxu0 0.0
    %181 = vmatpush1.xpose.msra.mxu0 0.0
    %182 = vmatprep.subr.mxu0 0.0
    %183 = vmatpush1.xpose.msra.mxu0 0.0
    %184 = vmatprep.subr.mxu0 0.0
    %185 = vmatpush1.xpose.msra.mxu0 0.0
    %186 = vmatprep.subr.mxu0 0.0
    %187 = vmatpush1.xpose.msra.mxu0 0.0
    %188 = vmatprep.subr.mxu0 0.0
    %189 = vmatpush1.xpose.msra.mxu0 0.0
    %190 = vmatprep.subr.mxu0 0.0
    %191 = vmatpush1.xpose.msra.mxu0 0.0
    %192 = vmatprep.subr.mxu0 0.0
    %193 = vmatpush1.xpose.msra.mxu0 0.0
    %194 = vmatprep.subr.mxu0 0.0
    %195 = vmatpush1.xpose.msra.mxu0 0.0
    %196 = vmatprep.subr.mxu0 0.0
    %197 = vmatpush1.xpose.msra.mxu0 0.0
    %198 = vmatprep.subr.mxu0 0.0
    %199 = vmatpush1.xpose.msra.mxu0 0.0
    %200 = vmatprep.subr.mxu0 0.0
    %201 = vmatpush1.xpose.msra.mxu0 0.0
    %202 = vmatprep.mubr.f32.mxu0 0.0
    %203 = vmatmul.mubr.f32.gmra.mrb[0].mxu0 %v133
    %v204 = vpop.f32.mrb[0].mxu0
    %v205 = vadd.f32 0.0, %v204
    %v206 = vpop.f32.mrb[0].mxu0
    %207 = vdwg.mxu0
    %v208 = vmul.f32 %v205, %v205
    %vm209 = vcmask 57344
    %v210 = vsel %vm209, %v208, 0.0
    %211 = vadd.xlane.f32.xlu0 %v210
    %v212 = vpop.xlane.xlu0 %211
    %v213 = vrot.slane %v212, 4
    %v214 = vadd.f32 %v212, %v213
    %v215 = vrot.slane %v214, 2
    %v216 = vadd.f32 %v214, %v215
    %v217 = vrot.slane %v216, 1
    %v218 = vadd.f32 %v216, %v217
    %s219 = vtos %v218
    %v220 = vstv %s219
    %v221 = vrsqrt.pop %v220
    %v222 = vmul.f32 %v220, %v221
    %vm223 = vcmp.eq.f32.partialorder %v220, inf
    %v224 = vsel %vm223, %v220, %v222
    %vm225 = vcmp.eq.f32.partialorder %v220, 0.0
    %v226 = vand.u32 %v220, 2147483648
    %v227 = vsel %vm225, %v226, %v224
    %s228 = vtos %v227
    %s229 = sadd.f32 %s228, 1e-12
    %v230 = vstv %s229
    %v231 = vrcp.pop %v230
    %s232 = vtos %v231
    %v233 = vstv %s232
    %v234 = vmul.f32 %v205, %v233
    %v235 = vmul.f32 %v234, %v205
    %v236 = vsel %vm209, %v235, 0.0
    %237 = vadd.xlane.f32.xlu0 %v236
    %v238 = vpop.xlane.xlu0 %237
    %v239 = vrcp.pop %v238
    %v240 = vmul.f32 1.0, %v239
    %vm241 = vcmask 0
    %242 = vst.msk [vmem:[#allocation5] sm:$0x1] %vm241, %v240
    %243 = vst.msk [vmem:[#allocation6] sm:$0x1] %vm209, %v234
    %244 = vst.msk [vmem:[#allocation8] sm:$0x1] %vm105, %v130
    // Predicated region
    $region14: #{tpu_custom_call.1} parent=1 // pred_check
      _
    $region15: #{tpu_custom_call.1} parent=1 // pred_check_branch
      %246 = sbr.rel (0) target = $region17
    $region16: #{tpu_custom_call.1} parent=1 // pred_region
      %s248 = ssub.s32 16, 16
      %249 = vsyncadd [#allocation4], %s248
      %s251 = sshll.u32 [#allocation5], 4
      %s252 = int_to_ptr.vmem [resolvable:$true] %s251
      %254 = dma.vmem_to_hbm [thread:$0]  %s252, 16, %s2, [#allocation4]
    $region17: #{tpu_custom_call.1} parent=1 // pred_fallthru
      _
    // Predicated region
    $region18: #{tpu_custom_call.1} parent=1 // pred_check
      _
    $region19: #{tpu_custom_call.1} parent=1 // pred_check_branch
      %256 = sbr.rel (0) target = $region21
    $region20: #{tpu_custom_call.1} parent=1 // pred_region
      %s258 = ssub.s32 16, 16
      %259 = vsyncadd [#allocation7], %s258
      %s261 = sshll.u32 [#allocation6], 4
      %s262 = int_to_ptr.vmem [resolvable:$true] %s261
      %264 = dma.vmem_to_hbm [thread:$0]  %s262, 16, %s3, [#allocation7]
    $region21: #{tpu_custom_call.1} parent=1 // pred_fallthru
      _
    // Predicated region
    $region22: #{tpu_custom_call.1} parent=1 // pred_check
      _
    $region23: #{tpu_custom_call.1} parent=1 // pred_check_branch
      %266 = sbr.rel (0) target = $region25
    $region24: #{tpu_custom_call.1} parent=1 // pred_region
      %s268 = ssub.s32 16, 16
      %269 = vsyncadd [#allocation7], %s268
      %s271 = sshll.u32 [#allocation8], 4
      %s272 = int_to_ptr.vmem [resolvable:$true] %s271
      %274 = dma.vmem_to_hbm [thread:$0]  %s272, 16, %s4, [#allocation7]
    $region25: #{tpu_custom_call.1} parent=1 // pred_fallthru
      _
    // Predicated region
    $region26: #{tpu_custom_call.1} parent=1 // pred_check
      _
    $region27: #{tpu_custom_call.1} parent=1 // pred_check_branch
      %276 = sbr.rel (0) target = $region29
    $region28: #{tpu_custom_call.1} parent=1 // pred_region
      %277 = dma.done [#allocation4], 16
    $region29: #{tpu_custom_call.1} parent=1 // pred_fallthru
      _
    // Predicated region
    $region30: #{tpu_custom_call.1} parent=1 // pred_check
      _
    $region31: #{tpu_custom_call.1} parent=1 // pred_check_branch
      %279 = sbr.rel (0) target = $region33
    $region32: #{tpu_custom_call.1} parent=1 // pred_region
      %280 = dma.done [#allocation7], 16
    $region33: #{tpu_custom_call.1} parent=1 // pred_fallthru
      _
    // Predicated region
    $region34: #{tpu_custom_call.1} parent=1 // pred_check
      _
    $region35: #{tpu_custom_call.1} parent=1 // pred_check_branch
      %282 = sbr.rel (0) target = $region37
    $region36: #{tpu_custom_call.1} parent=1 // pred_region
      %283 = dma.done [#allocation7], 16
    $region37: #{tpu_custom_call.1} parent=1 // pred_fallthru
      _
    %284 = vsyncpa [#allocation3], 1
    %285 = vsyncpa [#allocation4], 1
    %286 = vsyncpa [#allocation7], 1

</llo_original>
